<compile_context>
chip_gen: v7x
topology: tpu7x:2x2x1
jax: 0.10.0
libtpu: 0.0.40
codegen_flags: <defaults>
</compile_context>

<pallas_src>
import functools

import jax
import jax.numpy as jnp
from jax.experimental import pallas as pl
from jax.experimental.pallas import tpu as pltpu


def _decoder_kernel(x_ref, w_ih_t_ref, w_hh_t_ref, b_ref, w_fc_t_ref, b_fc_ref,
                    out_ref, h_hist_ref, *, seq_len: int, hidden_size: int):
    H = hidden_size
    B = x_ref.shape[0]

    x = x_ref[...].astype(jnp.float32)                               # (B, F)
    # Input projection is identical for every timestep (input was repeat()'ed),
    # so compute it once:  (B, 4H)
    x_proj = jnp.dot(x, w_ih_t_ref[...],
                     preferred_element_type=jnp.float32) + b_ref[...]
    w_hh_t = w_hh_t_ref[...]                                         # (H, 4H)

    h = jnp.zeros((B, H), jnp.float32)
    c = jnp.zeros((B, H), jnp.float32)

    # Statically unrolled recurrence (critical path: matmul -> gates -> c -> h).
    for t in range(seq_len):
        z = x_proj + jnp.dot(h, w_hh_t,
                             preferred_element_type=jnp.float32)     # (B, 4H)
        sig = jax.nn.sigmoid(z)              # one full-width EUP pass: i, f, o
        i_g = sig[:, 0 * H:1 * H]
        f_g = sig[:, 1 * H:2 * H]
        o_g = sig[:, 3 * H:4 * H]
        g_g = jnp.tanh(z[:, 2 * H:3 * H])
        c = f_g * c + i_g * g_g
        h = o_g * jnp.tanh(c)
        # Stash h_t for the deferred FC head.  t*B is a Python int -> static
        # offset VMEM store, off the h/c recurrence critical path.
        h_hist_ref[pl.ds(t * B, B), :] = h

    # Deferred FC head: one MXU pass + one contiguous output store.
    y = jnp.dot(h_hist_ref[...], w_fc_t_ref[...],
                preferred_element_type=jnp.float32) + b_fc_ref[...]  # (S*B, O)
    out_ref[...] = y.astype(out_ref.dtype)


def decoder_forward(x, params, *, seq_len: int, hidden_size: int):
    """x: (B, no_features). Returns (B, seq_len, output_size)."""
    w_ih, w_hh, b_ih, b_hh, w_fc, b_fc = params
    B, F = x.shape
    H = hidden_size
    O = w_fc.shape[0]

    # One-time layout plumbing in the wrapper so the kernel needs no transposes.
    w_ih_t = jnp.asarray(w_ih.T, jnp.float32)                  # (F, 4H)
    w_hh_t = jnp.asarray(w_hh.T, jnp.float32)                  # (H, 4H)
    w_fc_t = jnp.asarray(w_fc.T, jnp.float32)                  # (H, O)
    b_comb = (b_ih + b_hh).reshape(1, -1).astype(jnp.float32)  # (1, 4H)
    b_fc2 = b_fc.reshape(1, -1).astype(jnp.float32)            # (1, O)

    flops = (2 * B * F * 4 * H                     # x projection (once)
             + seq_len * 2 * B * H * 4 * H         # recurrent matmuls
             + 2 * seq_len * B * H * O             # deferred FC
             + seq_len * B * 10 * H)               # elementwise gate math
    transcendentals = seq_len * B * 6 * H          # sigmoid(4H) + 2x tanh(H)/step
    bytes_accessed = 4 * (x.size + w_ih_t.size + w_hh_t.size + b_comb.size
                          + w_fc_t.size + b_fc2.size + seq_len * B * O)

    vmem = pl.BlockSpec(memory_space=pltpu.MemorySpace.VMEM)
    out = pl.pallas_call(
        functools.partial(_decoder_kernel, seq_len=seq_len, hidden_size=hidden_size),
        out_shape=jax.ShapeDtypeStruct((seq_len * B, O), jnp.float32),
        in_specs=[vmem] * 6,
        out_specs=vmem,
        scratch_shapes=[pltpu.VMEM((seq_len * B, H), jnp.float32)],
        cost_estimate=pl.CostEstimate(flops=flops,
                                      transcendentals=transcendentals,
                                      bytes_accessed=bytes_accessed),
    )(x.astype(jnp.float32), w_ih_t, w_hh_t, b_comb, w_fc_t, b_fc2)

    # (S*B, O) rows are time-major; restore PyTorch batch_first layout
    # (tiny reshape/transpose handled by XLA outside the kernel).
    return jnp.transpose(out.reshape(seq_len, B, O), (1, 0, 2))


def _reference(x, params, *, seq_len: int, hidden_size: int):
    """Pure-JAX reference (PyTorch LSTM semantics, gate order i,f,g,o)."""
    w_ih, w_hh, b_ih, b_hh, w_fc, b_fc = params
    H = hidden_size
    B = x.shape[0]
    h = jnp.zeros((B, H), jnp.float32)
    c = jnp.zeros((B, H), jnp.float32)
    hs = []
    for _ in range(seq_len):
        z = x @ w_ih.T + b_ih + h @ w_hh.T + b_hh
        i = jax.nn.sigmoid(z[:, 0 * H:1 * H])
        f = jax.nn.sigmoid(z[:, 1 * H:2 * H])
        g = jnp.tanh(z[:, 2 * H:3 * H])
        o = jax.nn.sigmoid(z[:, 3 * H:4 * H])
        c = f * c + i * g
        h = o * jnp.tanh(c)
        hs.append(h)
    hseq = jnp.stack(hs, axis=1)                  # (B, S, H)
    return hseq @ w_fc.T + b_fc


def init_params(key, no_features, hidden_size, output_size):
    """Deterministic init matching PyTorch param shapes (uniform +/- 1/sqrt(H))."""
    ks = jax.random.split(key, 6)
    H = hidden_size
    k = 1.0 / jnp.sqrt(H)
    w_ih = jax.random.uniform(ks[0], (4 * H, no_features), jnp.float32, -k, k)
    w_hh = jax.random.uniform(ks[1], (4 * H, H), jnp.float32, -k, k)
    b_ih = jax.random.uniform(ks[2], (4 * H,), jnp.float32, -k, k)
    b_hh = jax.random.uniform(ks[3], (4 * H,), jnp.float32, -k, k)
    w_fc = jax.random.uniform(ks[4], (output_size, H), jnp.float32, -k, k)
    b_fc = jax.random.uniform(ks[5], (output_size,), jnp.float32, -k, k)
    return (w_ih, w_hh, b_ih, b_hh, w_fc, b_fc)


if __name__ == "__main__":
    # Small shapes consistent with _Decoder.forward: x is (batch, no_features).
    batch = 2
    seq_len = 8
    no_features = 4
    hidden_size = 32
    output_size = 4

    key = jax.random.PRNGKey(0)
    kx, kp = jax.random.split(key)
    x = jax.random.normal(kx, (batch, no_features), jnp.float32)
    params = init_params(kp, no_features, hidden_size, output_size)

    out = decoder_forward(x, params, seq_len=seq_len, hidden_size=hidden_size)
    out = jax.block_until_ready(out)

    ref = _reference(x, params, seq_len=seq_len, hidden_size=hidden_size)
    assert out.shape == (batch, seq_len, output_size)
    assert jnp.allclose(out, ref, atol=1e-5, rtol=1e-5), "mismatch vs reference"

    print("KERNEL_OK")
</pallas_src>

<mosaic_0001>
module attributes {stable_mosaic.version = 11 : i64} {
  func.func @_decoder_kernel(%arg0: memref<2x4xf32, #tpu.memory_space<vmem>>, %arg1: memref<4x128xf32, #tpu.memory_space<vmem>>, %arg2: memref<32x128xf32, #tpu.memory_space<vmem>>, %arg3: memref<1x128xf32, #tpu.memory_space<vmem>>, %arg4: memref<32x4xf32, #tpu.memory_space<vmem>>, %arg5: memref<1x4xf32, #tpu.memory_space<vmem>>, %arg6: memref<16x4xf32, #tpu.memory_space<vmem>>, %arg7: memref<16x32xf32, #tpu.memory_space<vmem>>) attributes {dimension_semantics = [], scalar_prefetch = 0 : i64, scratch_operands = 1 : i64, tpu.core_type = #tpu.core_type<tc>} {
    %c0 = arith.constant 0 : index
    %c0_0 = arith.constant 0 : index
    %0 = vector.load %arg0[%c0, %c0_0] : memref<2x4xf32, #tpu.memory_space<vmem>>, vector<2x4xf32>
    %c0_1 = arith.constant 0 : index
    %c0_2 = arith.constant 0 : index
    %1 = vector.load %arg1[%c0_1, %c0_2] : memref<4x128xf32, #tpu.memory_space<vmem>>, vector<4x128xf32>
    %cst = arith.constant dense<0.000000e+00> : vector<2x128xf32>
    %2 = tpu.matmul %0, %1, %cst {dimension_numbers = #tpu.dot_dimension_numbers<[1], [0], [0], [1], [0, 0, 1, 1], [], []>} : vector<2x4xf32>, vector<4x128xf32>, vector<2x128xf32> -> vector<2x128xf32>
    %c0_3 = arith.constant 0 : index
    %c0_4 = arith.constant 0 : index
    %3 = vector.load %arg3[%c0_3, %c0_4] : memref<1x128xf32, #tpu.memory_space<vmem>>, vector<1x128xf32>
    %4 = vector.broadcast %3 : vector<1x128xf32> to vector<2x128xf32>
    %5 = arith.addf %2, %4 : vector<2x128xf32>
    %c0_5 = arith.constant 0 : index
    %c0_6 = arith.constant 0 : index
    %6 = vector.load %arg2[%c0_5, %c0_6] : memref<32x128xf32, #tpu.memory_space<vmem>>, vector<32x128xf32>
    %cst_7 = arith.constant 0.000000e+00 : f32
    %7 = vector.broadcast %cst_7 : f32 to vector<2x32xf32>
    %cst_8 = arith.constant 0.000000e+00 : f32
    %8 = vector.broadcast %cst_8 : f32 to vector<2x32xf32>
    %cst_9 = arith.constant dense<0.000000e+00> : vector<2x128xf32>
    %9 = tpu.matmul %7, %6, %cst_9 {dimension_numbers = #tpu.dot_dimension_numbers<[1], [0], [0], [1], [0, 0, 1, 1], [], []>} : vector<2x32xf32>, vector<32x128xf32>, vector<2x128xf32> -> vector<2x128xf32>
    %10 = arith.addf %5, %9 : vector<2x128xf32>
    %11 = arith.negf %10 : vector<2x128xf32>
    %12 = math.exp %11 : vector<2x128xf32>
    %cst_10 = arith.constant 1.000000e+00 : f32
    %13 = vector.broadcast %cst_10 : f32 to vector<2x128xf32>
    %14 = arith.addf %13, %12 : vector<2x128xf32>
    %15 = arith.divf %13, %14 : vector<2x128xf32>
    %16 = vector.extract_strided_slice %15 {offsets = [0, 0], sizes = [2, 32], strides = [1, 1]} : vector<2x128xf32> to vector<2x32xf32>
    %17 = vector.extract_strided_slice %15 {offsets = [0, 32], sizes = [2, 32], strides = [1, 1]} : vector<2x128xf32> to vector<2x32xf32>
    %18 = vector.extract_strided_slice %15 {offsets = [0, 96], sizes = [2, 32], strides = [1, 1]} : vector<2x128xf32> to vector<2x32xf32>
    %19 = vector.extract_strided_slice %10 {offsets = [0, 64], sizes = [2, 32], strides = [1, 1]} : vector<2x128xf32> to vector<2x32xf32>
    %20 = math.tanh %19 : vector<2x32xf32>
    %21 = arith.mulf %17, %8 : vector<2x32xf32>
    %22 = arith.mulf %16, %20 : vector<2x32xf32>
    %23 = arith.addf %21, %22 : vector<2x32xf32>
    %24 = math.tanh %23 : vector<2x32xf32>
    %25 = arith.mulf %18, %24 : vector<2x32xf32>
    %c0_11 = arith.constant 0 : index
    %c0_12 = arith.constant 0 : index
    %26 = vector.load %arg7[%c0_11, %c0_12] : memref<16x32xf32, #tpu.memory_space<vmem>>, vector<2x32xf32>
    tpu.vector_store %arg7[%c0_11, %c0_12], %25 {strides = array<i32>} : memref<16x32xf32, #tpu.memory_space<vmem>>, vector<2x32xf32>,
    %cst_13 = arith.constant dense<0.000000e+00> : vector<2x128xf32>
    %27 = tpu.matmul %25, %6, %cst_13 {dimension_numbers = #tpu.dot_dimension_numbers<[1], [0], [0], [1], [0, 0, 1, 1], [], []>} : vector<2x32xf32>, vector<32x128xf32>, vector<2x128xf32> -> vector<2x128xf32>
    %28 = arith.addf %5, %27 : vector<2x128xf32>
    %29 = arith.negf %28 : vector<2x128xf32>
    %30 = math.exp %29 : vector<2x128xf32>
    %cst_14 = arith.constant 1.000000e+00 : f32
    %31 = vector.broadcast %cst_14 : f32 to vector<2x128xf32>
    %32 = arith.addf %31, %30 : vector<2x128xf32>
    %33 = arith.divf %31, %32 : vector<2x128xf32>
    %34 = vector.extract_strided_slice %33 {offsets = [0, 0], sizes = [2, 32], strides = [1, 1]} : vector<2x128xf32> to vector<2x32xf32>
    %35 = vector.extract_strided_slice %33 {offsets = [0, 32], sizes = [2, 32], strides = [1, 1]} : vector<2x128xf32> to vector<2x32xf32>
    %36 = vector.extract_strided_slice %33 {offsets = [0, 96], sizes = [2, 32], strides = [1, 1]} : vector<2x128xf32> to vector<2x32xf32>
    %37 = vector.extract_strided_slice %28 {offsets = [0, 64], sizes = [2, 32], strides = [1, 1]} : vector<2x128xf32> to vector<2x32xf32>
    %38 = math.tanh %37 : vector<2x32xf32>
    %39 = arith.mulf %35, %23 : vector<2x32xf32>
    %40 = arith.mulf %34, %38 : vector<2x32xf32>
    %41 = arith.addf %39, %40 : vector<2x32xf32>
    %42 = math.tanh %41 : vector<2x32xf32>
    %43 = arith.mulf %36, %42 : vector<2x32xf32>
    %c2 = arith.constant 2 : index
    %c0_15 = arith.constant 0 : index
    %44 = vector.load %arg7[%c2, %c0_15] : memref<16x32xf32, #tpu.memory_space<vmem>>, vector<2x32xf32>
    tpu.vector_store %arg7[%c2, %c0_15], %43 {strides = array<i32>} : memref<16x32xf32, #tpu.memory_space<vmem>>, vector<2x32xf32>,
    %cst_16 = arith.constant dense<0.000000e+00> : vector<2x128xf32>
    %45 = tpu.matmul %43, %6, %cst_16 {dimension_numbers = #tpu.dot_dimension_numbers<[1], [0], [0], [1], [0, 0, 1, 1], [], []>} : vector<2x32xf32>, vector<32x128xf32>, vector<2x128xf32> -> vector<2x128xf32>
    %46 = arith.addf %5, %45 : vector<2x128xf32>
    %47 = arith.negf %46 : vector<2x128xf32>
    %48 = math.exp %47 : vector<2x128xf32>
    %cst_17 = arith.constant 1.000000e+00 : f32
    %49 = vector.broadcast %cst_17 : f32 to vector<2x128xf32>
    %50 = arith.addf %49, %48 : vector<2x128xf32>
    %51 = arith.divf %49, %50 : vector<2x128xf32>
    %52 = vector.extract_strided_slice %51 {offsets = [0, 0], sizes = [2, 32], strides = [1, 1]} : vector<2x128xf32> to vector<2x32xf32>
    %53 = vector.extract_strided_slice %51 {offsets = [0, 32], sizes = [2, 32], strides = [1, 1]} : vector<2x128xf32> to vector<2x32xf32>
    %54 = vector.extract_strided_slice %51 {offsets = [0, 96], sizes = [2, 32], strides = [1, 1]} : vector<2x128xf32> to vector<2x32xf32>
    %55 = vector.extract_strided_slice %46 {offsets = [0, 64], sizes = [2, 32], strides = [1, 1]} : vector<2x128xf32> to vector<2x32xf32>
    %56 = math.tanh %55 : vector<2x32xf32>
    %57 = arith.mulf %53, %41 : vector<2x32xf32>
    %58 = arith.mulf %52, %56 : vector<2x32xf32>
    %59 = arith.addf %57, %58 : vector<2x32xf32>
    %60 = math.tanh %59 : vector<2x32xf32>
    %61 = arith.mulf %54, %60 : vector<2x32xf32>
    %c4 = arith.constant 4 : index
    %c0_18 = arith.constant 0 : index
    %62 = vector.load %arg7[%c4, %c0_18] : memref<16x32xf32, #tpu.memory_space<vmem>>, vector<2x32xf32>
    tpu.vector_store %arg7[%c4, %c0_18], %61 {strides = array<i32>} : memref<16x32xf32, #tpu.memory_space<vmem>>, vector<2x32xf32>,
    %cst_19 = arith.constant dense<0.000000e+00> : vector<2x128xf32>
    %63 = tpu.matmul %61, %6, %cst_19 {dimension_numbers = #tpu.dot_dimension_numbers<[1], [0], [0], [1], [0, 0, 1, 1], [], []>} : vector<2x32xf32>, vector<32x128xf32>, vector<2x128xf32> -> vector<2x128xf32>
    %64 = arith.addf %5, %63 : vector<2x128xf32>
    %65 = arith.negf %64 : vector<2x128xf32>
    %66 = math.exp %65 : vector<2x128xf32>
    %cst_20 = arith.constant 1.000000e+00 : f32
    %67 = vector.broadcast %cst_20 : f32 to vector<2x128xf32>
    %68 = arith.addf %67, %66 : vector<2x128xf32>
    %69 = arith.divf %67, %68 : vector<2x128xf32>
    %70 = vector.extract_strided_slice %69 {offsets = [0, 0], sizes = [2, 32], strides = [1, 1]} : vector<2x128xf32> to vector<2x32xf32>
    %71 = vector.extract_strided_slice %69 {offsets = [0, 32], sizes = [2, 32], strides = [1, 1]} : vector<2x128xf32> to vector<2x32xf32>
    %72 = vector.extract_strided_slice %69 {offsets = [0, 96], sizes = [2, 32], strides = [1, 1]} : vector<2x128xf32> to vector<2x32xf32>
    %73 = vector.extract_strided_slice %64 {offsets = [0, 64], sizes = [2, 32], strides = [1, 1]} : vector<2x128xf32> to vector<2x32xf32>
    %74 = math.tanh %73 : vector<2x32xf32>
    %75 = arith.mulf %71, %59 : vector<2x32xf32>
    %76 = arith.mulf %70, %74 : vector<2x32xf32>
    %77 = arith.addf %75, %76 : vector<2x32xf32>
    %78 = math.tanh %77 : vector<2x32xf32>
    %79 = arith.mulf %72, %78 : vector<2x32xf32>
    %c6 = arith.constant 6 : index
    %c0_21 = arith.constant 0 : index
    %80 = vector.load %arg7[%c6, %c0_21] : memref<16x32xf32, #tpu.memory_space<vmem>>, vector<2x32xf32>
    tpu.vector_store %arg7[%c6, %c0_21], %79 {strides = array<i32>} : memref<16x32xf32, #tpu.memory_space<vmem>>, vector<2x32xf32>,
    %cst_22 = arith.constant dense<0.000000e+00> : vector<2x128xf32>
    %81 = tpu.matmul %79, %6, %cst_22 {dimension_numbers = #tpu.dot_dimension_numbers<[1], [0], [0], [1], [0, 0, 1, 1], [], []>} : vector<2x32xf32>, vector<32x128xf32>, vector<2x128xf32> -> vector<2x128xf32>
    %82 = arith.addf %5, %81 : vector<2x128xf32>
    %83 = arith.negf %82 : vector<2x128xf32>
    %84 = math.exp %83 : vector<2x128xf32>
    %cst_23 = arith.constant 1.000000e+00 : f32
    %85 = vector.broadcast %cst_23 : f32 to vector<2x128xf32>
    %86 = arith.addf %85, %84 : vector<2x128xf32>
    %87 = arith.divf %85, %86 : vector<2x128xf32>
    %88 = vector.extract_strided_slice %87 {offsets = [0, 0], sizes = [2, 32], strides = [1, 1]} : vector<2x128xf32> to vector<2x32xf32>
    %89 = vector.extract_strided_slice %87 {offsets = [0, 32], sizes = [2, 32], strides = [1, 1]} : vector<2x128xf32> to vector<2x32xf32>
    %90 = vector.extract_strided_slice %87 {offsets = [0, 96], sizes = [2, 32], strides = [1, 1]} : vector<2x128xf32> to vector<2x32xf32>
    %91 = vector.extract_strided_slice %82 {offsets = [0, 64], sizes = [2, 32], strides = [1, 1]} : vector<2x128xf32> to vector<2x32xf32>
    %92 = math.tanh %91 : vector<2x32xf32>
    %93 = arith.mulf %89, %77 : vector<2x32xf32>
    %94 = arith.mulf %88, %92 : vector<2x32xf32>
    %95 = arith.addf %93, %94 : vector<2x32xf32>
    %96 = math.tanh %95 : vector<2x32xf32>
    %97 = arith.mulf %90, %96 : vector<2x32xf32>
    %c8 = arith.constant 8 : index
    %c0_24 = arith.constant 0 : index
    %98 = vector.load %arg7[%c8, %c0_24] : memref<16x32xf32, #tpu.memory_space<vmem>>, vector<2x32xf32>
    tpu.vector_store %arg7[%c8, %c0_24], %97 {strides = array<i32>} : memref<16x32xf32, #tpu.memory_space<vmem>>, vector<2x32xf32>,
    %cst_25 = arith.constant dense<0.000000e+00> : vector<2x128xf32>
    %99 = tpu.matmul %97, %6, %cst_25 {dimension_numbers = #tpu.dot_dimension_numbers<[1], [0], [0], [1], [0, 0, 1, 1], [], []>} : vector<2x32xf32>, vector<32x128xf32>, vector<2x128xf32> -> vector<2x128xf32>
    %100 = arith.addf %5, %99 : vector<2x128xf32>
    %101 = arith.negf %100 : vector<2x128xf32>
    %102 = math.exp %101 : vector<2x128xf32>
    %cst_26 = arith.constant 1.000000e+00 : f32
    %103 = vector.broadcast %cst_26 : f32 to vector<2x128xf32>
    %104 = arith.addf %103, %102 : vector<2x128xf32>
    %105 = arith.divf %103, %104 : vector<2x128xf32>
    %106 = vector.extract_strided_slice %105 {offsets = [0, 0], sizes = [2, 32], strides = [1, 1]} : vector<2x128xf32> to vector<2x32xf32>
    %107 = vector.extract_strided_slice %105 {offsets = [0, 32], sizes = [2, 32], strides = [1, 1]} : vector<2x128xf32> to vector<2x32xf32>
    %108 = vector.extract_strided_slice %105 {offsets = [0, 96], sizes = [2, 32], strides = [1, 1]} : vector<2x128xf32> to vector<2x32xf32>
    %109 = vector.extract_strided_slice %100 {offsets = [0, 64], sizes = [2, 32], strides = [1, 1]} : vector<2x128xf32> to vector<2x32xf32>
    %110 = math.tanh %109 : vector<2x32xf32>
    %111 = arith.mulf %107, %95 : vector<2x32xf32>
    %112 = arith.mulf %106, %110 : vector<2x32xf32>
    %113 = arith.addf %111, %112 : vector<2x32xf32>
    %114 = math.tanh %113 : vector<2x32xf32>
    %115 = arith.mulf %108, %114 : vector<2x32xf32>
    %c10 = arith.constant 10 : index
    %c0_27 = arith.constant 0 : index
    %116 = vector.load %arg7[%c10, %c0_27] : memref<16x32xf32, #tpu.memory_space<vmem>>, vector<2x32xf32>
    tpu.vector_store %arg7[%c10, %c0_27], %115 {strides = array<i32>} : memref<16x32xf32, #tpu.memory_space<vmem>>, vector<2x32xf32>,
    %cst_28 = arith.constant dense<0.000000e+00> : vector<2x128xf32>
    %117 = tpu.matmul %115, %6, %cst_28 {dimension_numbers = #tpu.dot_dimension_numbers<[1], [0], [0], [1], [0, 0, 1, 1], [], []>} : vector<2x32xf32>, vector<32x128xf32>, vector<2x128xf32> -> vector<2x128xf32>
    %118 = arith.addf %5, %117 : vector<2x128xf32>
    %119 = arith.negf %118 : vector<2x128xf32>
    %120 = math.exp %119 : vector<2x128xf32>
    %cst_29 = arith.constant 1.000000e+00 : f32
    %121 = vector.broadcast %cst_29 : f32 to vector<2x128xf32>
    %122 = arith.addf %121, %120 : vector<2x128xf32>
    %123 = arith.divf %121, %122 : vector<2x128xf32>
    %124 = vector.extract_strided_slice %123 {offsets = [0, 0], sizes = [2, 32], strides = [1, 1]} : vector<2x128xf32> to vector<2x32xf32>
    %125 = vector.extract_strided_slice %123 {offsets = [0, 32], sizes = [2, 32], strides = [1, 1]} : vector<2x128xf32> to vector<2x32xf32>
    %126 = vector.extract_strided_slice %123 {offsets = [0, 96], sizes = [2, 32], strides = [1, 1]} : vector<2x128xf32> to vector<2x32xf32>
    %127 = vector.extract_strided_slice %118 {offsets = [0, 64], sizes = [2, 32], strides = [1, 1]} : vector<2x128xf32> to vector<2x32xf32>
    %128 = math.tanh %127 : vector<2x32xf32>
    %129 = arith.mulf %125, %113 : vector<2x32xf32>
    %130 = arith.mulf %124, %128 : vector<2x32xf32>
    %131 = arith.addf %129, %130 : vector<2x32xf32>
    %132 = math.tanh %131 : vector<2x32xf32>
    %133 = arith.mulf %126, %132 : vector<2x32xf32>
    %c12 = arith.constant 12 : index
    %c0_30 = arith.constant 0 : index
    %134 = vector.load %arg7[%c12, %c0_30] : memref<16x32xf32, #tpu.memory_space<vmem>>, vector<2x32xf32>
    tpu.vector_store %arg7[%c12, %c0_30], %133 {strides = array<i32>} : memref<16x32xf32, #tpu.memory_space<vmem>>, vector<2x32xf32>,
    %cst_31 = arith.constant dense<0.000000e+00> : vector<2x128xf32>
    %135 = tpu.matmul %133, %6, %cst_31 {dimension_numbers = #tpu.dot_dimension_numbers<[1], [0], [0], [1], [0, 0, 1, 1], [], []>} : vector<2x32xf32>, vector<32x128xf32>, vector<2x128xf32> -> vector<2x128xf32>
    %136 = arith.addf %5, %135 : vector<2x128xf32>
    %137 = arith.negf %136 : vector<2x128xf32>
    %138 = math.exp %137 : vector<2x128xf32>
    %cst_32 = arith.constant 1.000000e+00 : f32
    %139 = vector.broadcast %cst_32 : f32 to vector<2x128xf32>
    %140 = arith.addf %139, %138 : vector<2x128xf32>
    %141 = arith.divf %139, %140 : vector<2x128xf32>
    %142 = vector.extract_strided_slice %141 {offsets = [0, 0], sizes = [2, 32], strides = [1, 1]} : vector<2x128xf32> to vector<2x32xf32>
    %143 = vector.extract_strided_slice %141 {offsets = [0, 32], sizes = [2, 32], strides = [1, 1]} : vector<2x128xf32> to vector<2x32xf32>
    %144 = vector.extract_strided_slice %141 {offsets = [0, 96], sizes = [2, 32], strides = [1, 1]} : vector<2x128xf32> to vector<2x32xf32>
    %145 = vector.extract_strided_slice %136 {offsets = [0, 64], sizes = [2, 32], strides = [1, 1]} : vector<2x128xf32> to vector<2x32xf32>
    %146 = math.tanh %145 : vector<2x32xf32>
    %147 = arith.mulf %143, %131 : vector<2x32xf32>
    %148 = arith.mulf %142, %146 : vector<2x32xf32>
    %149 = arith.addf %147, %148 : vector<2x32xf32>
    %150 = math.tanh %149 : vector<2x32xf32>
    %151 = arith.mulf %144, %150 : vector<2x32xf32>
    %c14 = arith.constant 14 : index
    %c0_33 = arith.constant 0 : index
    %152 = vector.load %arg7[%c14, %c0_33] : memref<16x32xf32, #tpu.memory_space<vmem>>, vector<2x32xf32>
    tpu.vector_store %arg7[%c14, %c0_33], %151 {strides = array<i32>} : memref<16x32xf32, #tpu.memory_space<vmem>>, vector<2x32xf32>,
    %c0_34 = arith.constant 0 : index
    %c0_35 = arith.constant 0 : index
    %153 = vector.load %arg7[%c0_34, %c0_35] : memref<16x32xf32, #tpu.memory_space<vmem>>, vector<16x32xf32>
    %c0_36 = arith.constant 0 : index
    %c0_37 = arith.constant 0 : index
    %154 = vector.load %arg4[%c0_36, %c0_37] : memref<32x4xf32, #tpu.memory_space<vmem>>, vector<32x4xf32>
    %cst_38 = arith.constant dense<0.000000e+00> : vector<16x4xf32>
    %155 = tpu.matmul %153, %154, %cst_38 {dimension_numbers = #tpu.dot_dimension_numbers<[1], [0], [0], [1], [0, 0, 1, 1], [], []>} : vector<16x32xf32>, vector<32x4xf32>, vector<16x4xf32> -> vector<16x4xf32>
    %c0_39 = arith.constant 0 : index
    %c0_40 = arith.constant 0 : index
    %156 = vector.load %arg5[%c0_39, %c0_40] : memref<1x4xf32, #tpu.memory_space<vmem>>, vector<1x4xf32>
    %157 = vector.broadcast %156 : vector<1x4xf32> to vector<16x4xf32>
    %158 = arith.addf %155, %157 : vector<16x4xf32>
    %c0_41 = arith.constant 0 : index
    %c0_42 = arith.constant 0 : index
    %159 = vector.load %arg6[%c0_41, %c0_42] : memref<16x4xf32, #tpu.memory_space<vmem>>, vector<16x4xf32>
    tpu.vector_store %arg6[%c0_41, %c0_42], %158 {strides = array<i32>} : memref<16x4xf32, #tpu.memory_space<vmem>>, vector<16x4xf32>,
    return
  }
}

</mosaic_0001>

<llo_original>
// kernel: tpu_custom_call.1
$region0: #{tpu_custom_call.1}
  #allocation0 [shape = 'u32[]', space=smem, size = 0x4, offset = 0x4, fixed_abs, tag = 'smem constant byte address 0x4 - core index']
  #allocation1 [shape = 'u32[144,128]{1,0:T(1,128)}', space=vmem, size = 0x12000, scoped, tag = 'internal scratch']
  #allocation2 [shape = 'f32[16,32]{1,0:T(8,128)}', space=vmem, size = 0x2000, scoped, tag = 'scratch operand']
  %s0 = inlined_call_operand.vmem [shape: f32[2,4], index: 0, kind: input, shape index: {}]
  %s1 = inlined_call_operand.vmem [shape: f32[4,128], index: 1, kind: input, shape index: {}]
  %s2 = inlined_call_operand.vmem [shape: f32[32,128], index: 2, kind: input, shape index: {}]
  %s3 = inlined_call_operand.vmem [shape: f32[1,128], index: 3, kind: input, shape index: {}]
  %s4 = inlined_call_operand.vmem [shape: f32[32,4], index: 4, kind: input, shape index: {}]
  %s5 = inlined_call_operand.vmem [shape: f32[1,4], index: 5, kind: input, shape index: {}]
  %s6 = inlined_call_operand.vmem [shape: f32[16,4], index: 6, kind: output, shape index: {}]
  %s7 = sld [smem:[#allocation0]]
  $region34: #{tpu_custom_call.1} parent=0
    _
  %s9 = ssub.s32 1, %s7
  %s10 = scalar_select 0, %s9, %s7
  // Predicated region
  $region2: #{tpu_custom_call.1} parent=0 // pred_check
    _
  $region3: #{tpu_custom_call.1} parent=0 // pred_check_branch
    %12 = sbr.rel (0) target = $region5
  $region4: #{tpu_custom_call.1} parent=0 // pred_region
    _
  $region5: #{tpu_custom_call.1} parent=0 // pred_fallthru
    _
  // Predicated region
  $region6: #{tpu_custom_call.1} parent=0 // pred_check
    _
  $region7: #{tpu_custom_call.1} parent=0 // pred_check_branch
    %14 = sbr.rel (0) target = $region9
  $region8: #{tpu_custom_call.1} parent=0 // pred_region
    _
  $region9: #{tpu_custom_call.1} parent=0 // pred_fallthru
    _
  // Predicated region
  $region10: #{tpu_custom_call.1} parent=0 // pred_check
    _
  $region11: #{tpu_custom_call.1} parent=0 // pred_check_branch
    %16 = sbr.rel (0) target = $region13
  $region12: #{tpu_custom_call.1} parent=0 // pred_region
    _
  $region13: #{tpu_custom_call.1} parent=0 // pred_fallthru
    _
  // Predicated region
  $region14: #{tpu_custom_call.1} parent=0 // pred_check
    _
  $region15: #{tpu_custom_call.1} parent=0 // pred_check_branch
    %18 = sbr.rel (0) target = $region17
  $region16: #{tpu_custom_call.1} parent=0 // pred_region
    _
  $region17: #{tpu_custom_call.1} parent=0 // pred_fallthru
    _
  // Predicated region
  $region18: #{tpu_custom_call.1} parent=0 // pred_check
    _
  $region19: #{tpu_custom_call.1} parent=0 // pred_check_branch
    %20 = sbr.rel (0) target = $region21
  $region20: #{tpu_custom_call.1} parent=0 // pred_region
    _
  $region21: #{tpu_custom_call.1} parent=0 // pred_fallthru
    _
  // Predicated region
  $region22: #{tpu_custom_call.1} parent=0 // pred_check
    _
  $region23: #{tpu_custom_call.1} parent=0 // pred_check_branch
    %22 = sbr.rel (0) target = $region25
  $region24: #{tpu_custom_call.1} parent=0 // pred_region
    _
  $region25: #{tpu_custom_call.1} parent=0 // pred_fallthru
    _
  %v23 = vld [vmem:[%s0] sm:$0x3]
  %v24 = vld [vmem:[%s1] sm:$0xf]
  %v25 = vld [vmem:[%s3] sm:$0x1]
  %v27 = vlaneseq
  %v28 = vshrl.u32 %v27, 7
  %v29 = vsub.s32 0, %v28
  %v30 = vrot.slane %v25, %v29
  %vm32 = vcmask 31744
  %v34 = vsel %vm32, %v23, 0
  %vm36 = vcmask 1043456
  %v38 = vsel %vm36, %v24, 0
  %40 = vmatprep.subr.mxu0 0.0
  %41 = vmatpush1.msra.mxu0 %v38
  %42 = vmatprep.subr.mxu0 0.0
  %43 = vmatpush1.msra.mxu0 0.0
  %44 = vmatprep.subr.mxu0 0.0
  %45 = vmatpush1.msra.mxu0 0.0
  %46 = vmatprep.subr.mxu0 0.0
  %47 = vmatpush1.msra.mxu0 0.0
  %48 = vmatprep.subr.mxu0 0.0
  %49 = vmatpush1.msra.mxu0 0.0
  %50 = vmatprep.subr.mxu0 0.0
  %51 = vmatpush1.msra.mxu0 0.0
  %52 = vmatprep.subr.mxu0 0.0
  %53 = vmatpush1.msra.mxu0 0.0
  %54 = vmatprep.subr.mxu0 0.0
  %55 = vmatpush1.msra.mxu0 0.0
  %56 = vmatprep.subr.mxu0 0.0
  %57 = vmatpush1.msra.mxu0 0.0
  %58 = vmatprep.subr.mxu0 0.0
  %59 = vmatpush1.msra.mxu0 0.0
  %60 = vmatprep.subr.mxu0 0.0
  %61 = vmatpush1.msra.mxu0 0.0
  %62 = vmatprep.subr.mxu0 0.0
  %63 = vmatpush1.msra.mxu0 0.0
  %64 = vmatprep.subr.mxu0 0.0
  %65 = vmatpush1.msra.mxu0 0.0
  %66 = vmatprep.subr.mxu0 0.0
  %67 = vmatpush1.msra.mxu0 0.0
  %68 = vmatprep.subr.mxu0 0.0
  %69 = vmatpush1.msra.mxu0 0.0
  %70 = vmatprep.subr.mxu0 0.0
  %71 = vmatpush1.msra.mxu0 0.0
  %72 = vmatprep.subr.mxu0 0.0
  %73 = vmatpush1.msra.mxu0 0.0
  %74 = vmatprep.subr.mxu0 0.0
  %75 = vmatpush1.msra.mxu0 0.0
  %76 = vmatprep.subr.mxu0 0.0
  %77 = vmatpush1.msra.mxu0 0.0
  %78 = vmatprep.subr.mxu0 0.0
  %79 = vmatpush1.msra.mxu0 0.0
  %80 = vmatprep.subr.mxu0 0.0
  %81 = vmatpush1.msra.mxu0 0.0
  %82 = vmatprep.subr.mxu0 0.0
  %83 = vmatpush1.msra.mxu0 0.0
  %84 = vmatprep.subr.mxu0 0.0
  %85 = vmatpush1.msra.mxu0 0.0
  %86 = vmatprep.subr.mxu0 0.0
  %87 = vmatpush1.msra.mxu0 0.0
  %88 = vmatprep.subr.mxu0 0.0
  %89 = vmatpush1.msra.mxu0 0.0
  %90 = vmatprep.subr.mxu0 0.0
  %91 = vmatpush1.msra.mxu0 0.0
  %92 = vmatprep.subr.mxu0 0.0
  %93 = vmatpush1.msra.mxu0 0.0
  %94 = vmatprep.subr.mxu0 0.0
  %95 = vmatpush1.msra.mxu0 0.0
  %96 = vmatprep.subr.mxu0 0.0
  %97 = vmatpush1.msra.mxu0 0.0
  %98 = vmatprep.subr.mxu0 0.0
  %99 = vmatpush1.msra.mxu0 0.0
  %100 = vmatprep.subr.mxu0 0.0
  %101 = vmatpush1.msra.mxu0 0.0
  %102 = vmatprep.subr.mxu0 0.0
  %103 = vmatpush1.msra.mxu0 0.0
  %104 = vmatprep.mubr.f32.mxu0 0.0
  %105 = vmatmul.mubr.f32.gmra.mrb[0].mxu0 %v34
  %v106 = vpop.f32.mrb[0].mxu0
  %v107 = vadd.f32 %v30, %v106
  %v108 = vpop.f32.mrb[0].mxu0
  %109 = vdwg.mxu0
  %v110 = vld [vmem:[%s2] sm:$0xff]
  %v111 = vld [vmem:[%s2 + $0x8] sm:$0xff]
  %v112 = vld [vmem:[%s2 + $0x10] sm:$0xff]
  %v113 = vld [vmem:[%s2 + $0x18] sm:$0xff]
  %vm114 = vcmask 261120
  %v116 = vsel %vm114, 0.0, 0
  %118 = vmatprep.subr.mxu0 0.0
  %119 = vmatpush1.msra.mxu0 %v110
  %120 = vmatprep.subr.mxu0 0.0
  %121 = vmatpush1.msra.mxu0 %v111
  %122 = vmatprep.subr.mxu0 0.0
  %123 = vmatpush1.msra.mxu0 %v112
  %124 = vmatprep.subr.mxu0 0.0
  %125 = vmatpush1.msra.mxu0 %v113
  %126 = vmatprep.subr.mxu0 0.0
  %127 = vmatpush1.msra.mxu0 0.0
  %128 = vmatprep.subr.mxu0 0.0
  %129 = vmatpush1.msra.mxu0 0.0
  %130 = vmatprep.subr.mxu0 0.0
  %131 = vmatpush1.msra.mxu0 0.0
  %132 = vmatprep.subr.mxu0 0.0
  %133 = vmatpush1.msra.mxu0 0.0
  %134 = vmatprep.subr.mxu0 0.0
  %135 = vmatpush1.msra.mxu0 0.0
  %136 = vmatprep.subr.mxu0 0.0
  %137 = vmatpush1.msra.mxu0 0.0
  %138 = vmatprep.subr.mxu0 0.0
  %139 = vmatpush1.msra.mxu0 0.0
  %140 = vmatprep.subr.mxu0 0.0
  %141 = vmatpush1.msra.mxu0 0.0
  %142 = vmatprep.subr.mxu0 0.0
  %143 = vmatpush1.msra.mxu0 0.0
  %144 = vmatprep.subr.mxu0 0.0
  %145 = vmatpush1.msra.mxu0 0.0
  %146 = vmatprep.subr.mxu0 0.0
  %147 = vmatpush1.msra.mxu0 0.0
  %148 = vmatprep.subr.mxu0 0.0
  %149 = vmatpush1.msra.mxu0 0.0
  %150 = vmatprep.subr.mxu0 0.0
  %151 = vmatpush1.msra.mxu0 0.0
  %152 = vmatprep.subr.mxu0 0.0
  %153 = vmatpush1.msra.mxu0 0.0
  %154 = vmatprep.subr.mxu0 0.0
  %155 = vmatpush1.msra.mxu0 0.0
  %156 = vmatprep.subr.mxu0 0.0
  %157 = vmatpush1.msra.mxu0 0.0
  %158 = vmatprep.subr.mxu0 0.0
  %159 = vmatpush1.msra.mxu0 0.0
  %160 = vmatprep.subr.mxu0 0.0
  %161 = vmatpush1.msra.mxu0 0.0
  %162 = vmatprep.subr.mxu0 0.0
  %163 = vmatpush1.msra.mxu0 0.0
  %164 = vmatprep.subr.mxu0 0.0
  %165 = vmatpush1.msra.mxu0 0.0
  %166 = vmatprep.subr.mxu0 0.0
  %167 = vmatpush1.msra.mxu0 0.0
  %168 = vmatprep.subr.mxu0 0.0
  %169 = vmatpush1.msra.mxu0 0.0
  %170 = vmatprep.subr.mxu0 0.0
  %171 = vmatpush1.msra.mxu0 0.0
  %172 = vmatprep.subr.mxu0 0.0
  %173 = vmatpush1.msra.mxu0 0.0
  %174 = vmatprep.subr.mxu0 0.0
  %175 = vmatpush1.msra.mxu0 0.0
  %176 = vmatprep.subr.mxu0 0.0
  %177 = vmatpush1.msra.mxu0 0.0
  %178 = vmatprep.subr.mxu0 0.0
  %179 = vmatpush1.msra.mxu0 0.0
  %180 = vmatprep.subr.mxu0 0.0
  %181 = vmatpush1.msra.mxu0 0.0
  %182 = vmatprep.mubr.f32.mxu0 0.0
  %183 = vmatmul.mubr.f32.gmra.mrb[0].mxu0 %v116
  %v184 = vpop.f32.mrb[0].mxu0
  %v185 = vadd.f32 0.0, %v184
  %v186 = vpop.f32.mrb[0].mxu0
  %187 = vdwg.mxu0
  %v188 = vadd.f32 %v107, %v185
  %v189 = vxor.u32 %v188, 2147483648
  %v190 = vmul.f32 %v189, 1.442695
  %v191 = vpow.pop %v190
  %v192 = vadd.f32 %v191, 1.0
  %v193 = vrcp.pop %v192
  %v194 = vmul.f32 1.0, %v193
  %v195 = vtanh.pop %v188
  %v196 = vmul.f32 %v194, 0.0
  %198 = vrot.lane.b32.xlu0 %v195, 64
  %v199 = vpop.permute.xlu0 %198
  %v201 = vmul.f32 %v194, %v199
  %203 = vrot.lane.b32.xlu0 %v201, 32
  %v204 = vpop.permute.xlu0 %203
  %v206 = vadd.f32 %v196, %v204
  %v207 = vtanh.pop %v206
  %209 = vrot.lane.b32.xlu0 %v207, 64
  %v210 = vpop.permute.xlu0 %209
  %v212 = vmul.f32 %v194, %v210
  %214 = vrot.lane.b32.xlu0 %v212, 32
  %v215 = vpop.permute.xlu0 %214
  %vm217 = vcmask 254976
  %218 = vst.msk [vmem:[#allocation2] sm:$0x3] %vm217, %v215
  %v219 = vsel %vm114, %v215, 0
  %221 = vmatprep.subr.mxu0 0.0
  %222 = vmatpush1.msra.mxu0 %v110
  %223 = vmatprep.subr.mxu0 0.0
  %224 = vmatpush1.msra.mxu0 %v111
  %225 = vmatprep.subr.mxu0 0.0
  %226 = vmatpush1.msra.mxu0 %v112
  %227 = vmatprep.subr.mxu0 0.0
  %228 = vmatpush1.msra.mxu0 %v113
  %229 = vmatprep.subr.mxu0 0.0
  %230 = vmatpush1.msra.mxu0 0.0
  %231 = vmatprep.subr.mxu0 0.0
  %232 = vmatpush1.msra.mxu0 0.0
  %233 = vmatprep.subr.mxu0 0.0
  %234 = vmatpush1.msra.mxu0 0.0
  %235 = vmatprep.subr.mxu0 0.0
  %236 = vmatpush1.msra.mxu0 0.0
  %237 = vmatprep.subr.mxu0 0.0
  %238 = vmatpush1.msra.mxu0 0.0
  %239 = vmatprep.subr.mxu0 0.0
  %240 = vmatpush1.msra.mxu0 0.0
  %241 = vmatprep.subr.mxu0 0.0
  %242 = vmatpush1.msra.mxu0 0.0
  %243 = vmatprep.subr.mxu0 0.0
  %244 = vmatpush1.msra.mxu0 0.0
  %245 = vmatprep.subr.mxu0 0.0
  %246 = vmatpush1.msra.mxu0 0.0
  %247 = vmatprep.subr.mxu0 0.0
  %248 = vmatpush1.msra.mxu0 0.0
  %249 = vmatprep.subr.mxu0 0.0
  %250 = vmatpush1.msra.mxu0 0.0
  %251 = vmatprep.subr.mxu0 0.0
  %252 = vmatpush1.msra.mxu0 0.0
  %253 = vmatprep.subr.mxu0 0.0
  %254 = vmatpush1.msra.mxu0 0.0
  %255 = vmatprep.subr.mxu0 0.0
  %256 = vmatpush1.msra.mxu0 0.0
  %257 = vmatprep.subr.mxu0 0.0
  %258 = vmatpush1.msra.mxu0 0.0
  %259 = vmatprep.subr.mxu0 0.0
  %260 = vmatpush1.msra.mxu0 0.0
  %261 = vmatprep.subr.mxu0 0.0
  %262 = vmatpush1.msra.mxu0 0.0
  %263 = vmatprep.subr.mxu0 0.0
  %264 = vmatpush1.msra.mxu0 0.0
  %265 = vmatprep.subr.mxu0 0.0
  %266 = vmatpush1.msra.mxu0 0.0
  %267 = vmatprep.subr.mxu0 0.0
  %268 = vmatpush1.msra.mxu0 0.0
  %269 = vmatprep.subr.mxu0 0.0
  %270 = vmatpush1.msra.mxu0 0.0
  %271 = vmatprep.subr.mxu0 0.0
  %272 = vmatpush1.msra.mxu0 0.0
  %273 = vmatprep.subr.mxu0 0.0
  %274 = vmatpush1.msra.mxu0 0.0
  %275 = vmatprep.subr.mxu0 0.0
  %276 = vmatpush1.msra.mxu0 0.0
  %277 = vmatprep.subr.mxu0 0.0
  %278 = vmatpush1.msra.mxu0 0.0
  %279 = vmatprep.subr.mxu0 0.0
  %280 = vmatpush1.msra.mxu0 0.0
  %281 = vmatprep.subr.mxu0 0.0
  %282 = vmatpush1.msra.mxu0 0.0
  %283 = vmatprep.subr.mxu0 0.0
  %284 = vmatpush1.msra.mxu0 0.0
  %285 = vmatprep.mubr.f32.mxu0 0.0
  %286 = vmatmul.mubr.f32.gmra.mrb[0].mxu0 %v219
  %v287 = vpop.f32.mrb[0].mxu0
  %v288 = vadd.f32 0.0, %v287
  %v289 = vpop.f32.mrb[0].mxu0
  %290 = vdwg.mxu0
  %v291 = vadd.f32 %v107, %v288
  %v292 = vxor.u32 %v291, 2147483648
  %v293 = vmul.f32 %v292, 1.442695
  %v294 = vpow.pop %v293
  %v295 = vadd.f32 %v294, 1.0
  %v296 = vrcp.pop %v295
  %v297 = vmul.f32 1.0, %v296
  %v298 = vtanh.pop %v291
  %v299 = vmul.f32 %v297, %v206
  %301 = vrot.lane.b32.xlu0 %v298, 64
  %v302 = vpop.permute.xlu0 %301
  %v304 = vmul.f32 %v297, %v302
  %306 = vrot.lane.b32.xlu0 %v304, 32
  %v307 = vpop.permute.xlu0 %306
  %v309 = vadd.f32 %v299, %v307
  %v310 = vtanh.pop %v309
  %312 = vrot.lane.b32.xlu0 %v310, 64
  %v313 = vpop.permute.xlu0 %312
  %v315 = vmul.f32 %v297, %v313
  %317 = vrot.lane.b32.xlu0 %v315, 32
  %v318 = vpop.permute.xlu0 %317
  %320 = vst.msk [vmem:[#allocation2 + $0x2] sm:$0x3] %vm217, %v318
  %v321 = vsel %vm114, %v318, 0
  %323 = vmatprep.subr.mxu0 0.0
  %324 = vmatpush1.msra.mxu0 %v110
  %325 = vmatprep.subr.mxu0 0.0
  %326 = vmatpush1.msra.mxu0 %v111
  %327 = vmatprep.subr.mxu0 0.0
  %328 = vmatpush1.msra.mxu0 %v112
  %329 = vmatprep.subr.mxu0 0.0
  %330 = vmatpush1.msra.mxu0 %v113
  %331 = vmatprep.subr.mxu0 0.0
  %332 = vmatpush1.msra.mxu0 0.0
  %333 = vmatprep.subr.mxu0 0.0
  %334 = vmatpush1.msra.mxu0 0.0
  %335 = vmatprep.subr.mxu0 0.0
  %336 = vmatpush1.msra.mxu0 0.0
  %337 = vmatprep.subr.mxu0 0.0
  %338 = vmatpush1.msra.mxu0 0.0
  %339 = vmatprep.subr.mxu0 0.0
  %340 = vmatpush1.msra.mxu0 0.0
  %341 = vmatprep.subr.mxu0 0.0
  %342 = vmatpush1.msra.mxu0 0.0
  %343 = vmatprep.subr.mxu0 0.0
  %344 = vmatpush1.msra.mxu0 0.0
  %345 = vmatprep.subr.mxu0 0.0
  %346 = vmatpush1.msra.mxu0 0.0
  %347 = vmatprep.subr.mxu0 0.0
  %348 = vmatpush1.msra.mxu0 0.0
  %349 = vmatprep.subr.mxu0 0.0
  %350 = vmatpush1.msra.mxu0 0.0
  %351 = vmatprep.subr.mxu0 0.0
  %352 = vmatpush1.msra.mxu0 0.0
  %353 = vmatprep.subr.mxu0 0.0
  %354 = vmatpush1.msra.mxu0 0.0
  %355 = vmatprep.subr.mxu0 0.0
  %356 = vmatpush1.msra.mxu0 0.0
  %357 = vmatprep.subr.mxu0 0.0
  %358 = vmatpush1.msra.mxu0 0.0
  %359 = vmatprep.subr.mxu0 0.0
  %360 = vmatpush1.msra.mxu0 0.0
  %361 = vmatprep.subr.mxu0 0.0
  %362 = vmatpush1.msra.mxu0 0.0
  %363 = vmatprep.subr.mxu0 0.0
  %364 = vmatpush1.msra.mxu0 0.0
  %365 = vmatprep.subr.mxu0 0.0
  %366 = vmatpush1.msra.mxu0 0.0
  %367 = vmatprep.subr.mxu0 0.0
  %368 = vmatpush1.msra.mxu0 0.0
  %369 = vmatprep.subr.mxu0 0.0
  %370 = vmatpush1.msra.mxu0 0.0
  %371 = vmatprep.subr.mxu0 0.0
  %372 = vmatpush1.msra.mxu0 0.0
  %373 = vmatprep.subr.mxu0 0.0
  %374 = vmatpush1.msra.mxu0 0.0
  %375 = vmatprep.subr.mxu0 0.0
  %376 = vmatpush1.msra.mxu0 0.0
  %377 = vmatprep.subr.mxu0 0.0
  %378 = vmatpush1.msra.mxu0 0.0
  %379 = vmatprep.subr.mxu0 0.0
  %380 = vmatpush1.msra.mxu0 0.0
  %381 = vmatprep.subr.mxu0 0.0
  %382 = vmatpush1.msra.mxu0 0.0
  %383 = vmatprep.subr.mxu0 0.0
  %384 = vmatpush1.msra.mxu0 0.0
  %385 = vmatprep.subr.mxu0 0.0
  %386 = vmatpush1.msra.mxu0 0.0
  %387 = vmatprep.mubr.f32.mxu0 0.0
  %388 = vmatmul.mubr.f32.gmra.mrb[0].mxu0 %v321
  %v389 = vpop.f32.mrb[0].mxu0
  %v390 = vadd.f32 0.0, %v389
  %v391 = vpop.f32.mrb[0].mxu0
  %392 = vdwg.mxu0
  %v393 = vadd.f32 %v107, %v390
  %v394 = vxor.u32 %v393, 2147483648
  %v395 = vmul.f32 %v394, 1.442695
  %v396 = vpow.pop %v395
  %v397 = vadd.f32 %v396, 1.0
  %v398 = vrcp.pop %v397
  %v399 = vmul.f32 1.0, %v398
  %v400 = vtanh.pop %v393
  %v401 = vmul.f32 %v399, %v309
  %403 = vrot.lane.b32.xlu0 %v400, 64
  %v404 = vpop.permute.xlu0 %403
  %v406 = vmul.f32 %v399, %v404
  %408 = vrot.lane.b32.xlu0 %v406, 32
  %v409 = vpop.permute.xlu0 %408
  %v411 = vadd.f32 %v401, %v409
  %v412 = vtanh.pop %v411
  %414 = vrot.lane.b32.xlu0 %v412, 64
  %v415 = vpop.permute.xlu0 %414
  %v417 = vmul.f32 %v399, %v415
  %419 = vrot.lane.b32.xlu0 %v417, 32
  %v420 = vpop.permute.xlu0 %419
  %422 = vst.msk [vmem:[#allocation2 + $0x4] sm:$0x3] %vm217, %v420
  %v423 = vsel %vm114, %v420, 0
  %425 = vmatprep.subr.mxu0 0.0
  %426 = vmatpush1.msra.mxu0 %v110
  %427 = vmatprep.subr.mxu0 0.0
  %428 = vmatpush1.msra.mxu0 %v111
  %429 = vmatprep.subr.mxu0 0.0
  %430 = vmatpush1.msra.mxu0 %v112
  %431 = vmatprep.subr.mxu0 0.0
  %432 = vmatpush1.msra.mxu0 %v113
  %433 = vmatprep.subr.mxu0 0.0
  %434 = vmatpush1.msra.mxu0 0.0
  %435 = vmatprep.subr.mxu0 0.0
  %436 = vmatpush1.msra.mxu0 0.0
  %437 = vmatprep.subr.mxu0 0.0
  %438 = vmatpush1.msra.mxu0 0.0
  %439 = vmatprep.subr.mxu0 0.0
  %440 = vmatpush1.msra.mxu0 0.0
  %441 = vmatprep.subr.mxu0 0.0
  %442 = vmatpush1.msra.mxu0 0.0
  %443 = vmatprep.subr.mxu0 0.0
  %444 = vmatpush1.msra.mxu0 0.0
  %445 = vmatprep.subr.mxu0 0.0
  %446 = vmatpush1.msra.mxu0 0.0
  %447 = vmatprep.subr.mxu0 0.0
  %448 = vmatpush1.msra.mxu0 0.0
  %449 = vmatprep.subr.mxu0 0.0
  %450 = vmatpush1.msra.mxu0 0.0
  %451 = vmatprep.subr.mxu0 0.0
  %452 = vmatpush1.msra.mxu0 0.0
  %453 = vmatprep.subr.mxu0 0.0
  %454 = vmatpush1.msra.mxu0 0.0
  %455 = vmatprep.subr.mxu0 0.0
  %456 = vmatpush1.msra.mxu0 0.0
  %457 = vmatprep.subr.mxu0 0.0
  %458 = vmatpush1.msra.mxu0 0.0
  %459 = vmatprep.subr.mxu0 0.0
  %460 = vmatpush1.msra.mxu0 0.0
  %461 = vmatprep.subr.mxu0 0.0
  %462 = vmatpush1.msra.mxu0 0.0
  %463 = vmatprep.subr.mxu0 0.0
  %464 = vmatpush1.msra.mxu0 0.0
  %465 = vmatprep.subr.mxu0 0.0
  %466 = vmatpush1.msra.mxu0 0.0
  %467 = vmatprep.subr.mxu0 0.0
  %468 = vmatpush1.msra.mxu0 0.0
  %469 = vmatprep.subr.mxu0 0.0
  %470 = vmatpush1.msra.mxu0 0.0
  %471 = vmatprep.subr.mxu0 0.0
  %472 = vmatpush1.msra.mxu0 0.0
  %473 = vmatprep.subr.mxu0 0.0
  %474 = vmatpush1.msra.mxu0 0.0
  %475 = vmatprep.subr.mxu0 0.0
  %476 = vmatpush1.msra.mxu0 0.0
  %477 = vmatprep.subr.mxu0 0.0
  %478 = vmatpush1.msra.mxu0 0.0
  %479 = vmatprep.subr.mxu0 0.0
  %480 = vmatpush1.msra.mxu0 0.0
  %481 = vmatprep.subr.mxu0 0.0
  %482 = vmatpush1.msra.mxu0 0.0
  %483 = vmatprep.subr.mxu0 0.0
  %484 = vmatpush1.msra.mxu0 0.0
  %485 = vmatprep.subr.mxu0 0.0
  %486 = vmatpush1.msra.mxu0 0.0
  %487 = vmatprep.subr.mxu0 0.0
  %488 = vmatpush1.msra.mxu0 0.0
  %489 = vmatprep.mubr.f32.mxu0 0.0
  %490 = vmatmul.mubr.f32.gmra.mrb[0].mxu0 %v423
  %v491 = vpop.f32.mrb[0].mxu0
  %v492 = vadd.f32 0.0, %v491
  %v493 = vpop.f32.mrb[0].mxu0
  %494 = vdwg.mxu0
  %v495 = vadd.f32 %v107, %v492
  %v496 = vxor.u32 %v495, 2147483648
  %v497 = vmul.f32 %v496, 1.442695
  %v498 = vpow.pop %v497
  %v499 = vadd.f32 %v498, 1.0
  %v500 = vrcp.pop %v499
  %v501 = vmul.f32 1.0, %v500
  %v502 = vtanh.pop %v495
  %v503 = vmul.f32 %v501, %v411
  %505 = vrot.lane.b32.xlu0 %v502, 64
  %v506 = vpop.permute.xlu0 %505
  %v508 = vmul.f32 %v501, %v506
  %510 = vrot.lane.b32.xlu0 %v508, 32
  %v511 = vpop.permute.xlu0 %510
  %v513 = vadd.f32 %v503, %v511
  %v514 = vtanh.pop %v513
  %516 = vrot.lane.b32.xlu0 %v514, 64
  %v517 = vpop.permute.xlu0 %516
  %v519 = vmul.f32 %v501, %v517
  %521 = vrot.lane.b32.xlu0 %v519, 32
  %v522 = vpop.permute.xlu0 %521
  %524 = vst.msk [vmem:[#allocation2 + $0x6] sm:$0x3] %vm217, %v522
  %v525 = vsel %vm114, %v522, 0
  %527 = vmatprep.subr.mxu0 0.0
  %528 = vmatpush1.msra.mxu0 %v110
  %529 = vmatprep.subr.mxu0 0.0
  %530 = vmatpush1.msra.mxu0 %v111
  %531 = vmatprep.subr.mxu0 0.0
  %532 = vmatpush1.msra.mxu0 %v112
  %533 = vmatprep.subr.mxu0 0.0
  %534 = vmatpush1.msra.mxu0 %v113
  %535 = vmatprep.subr.mxu0 0.0
  %536 = vmatpush1.msra.mxu0 0.0
  %537 = vmatprep.subr.mxu0 0.0
  %538 = vmatpush1.msra.mxu0 0.0
  %539 = vmatprep.subr.mxu0 0.0
  %540 = vmatpush1.msra.mxu0 0.0
  %541 = vmatprep.subr.mxu0 0.0
  %542 = vmatpush1.msra.mxu0 0.0
  %543 = vmatprep.subr.mxu0 0.0
  %544 = vmatpush1.msra.mxu0 0.0
  %545 = vmatprep.subr.mxu0 0.0
  %546 = vmatpush1.msra.mxu0 0.0
  %547 = vmatprep.subr.mxu0 0.0
  %548 = vmatpush1.msra.mxu0 0.0
  %549 = vmatprep.subr.mxu0 0.0
  %550 = vmatpush1.msra.mxu0 0.0
  %551 = vmatprep.subr.mxu0 0.0
  %552 = vmatpush1.msra.mxu0 0.0
  %553 = vmatprep.subr.mxu0 0.0
  %554 = vmatpush1.msra.mxu0 0.0
  %555 = vmatprep.subr.mxu0 0.0
  %556 = vmatpush1.msra.mxu0 0.0
  %557 = vmatprep.subr.mxu0 0.0
  %558 = vmatpush1.msra.mxu0 0.0
  %559 = vmatprep.subr.mxu0 0.0
  %560 = vmatpush1.msra.mxu0 0.0
  %561 = vmatprep.subr.mxu0 0.0
  %562 = vmatpush1.msra.mxu0 0.0
  %563 = vmatprep.subr.mxu0 0.0
  %564 = vmatpush1.msra.mxu0 0.0
  %565 = vmatprep.subr.mxu0 0.0
  %566 = vmatpush1.msra.mxu0 0.0
  %567 = vmatprep.subr.mxu0 0.0
  %568 = vmatpush1.msra.mxu0 0.0
  %569 = vmatprep.subr.mxu0 0.0
  %570 = vmatpush1.msra.mxu0 0.0
  %571 = vmatprep.subr.mxu0 0.0
  %572 = vmatpush1.msra.mxu0 0.0
  %573 = vmatprep.subr.mxu0 0.0
  %574 = vmatpush1.msra.mxu0 0.0
  %575 = vmatprep.subr.mxu0 0.0
  %576 = vmatpush1.msra.mxu0 0.0
  %577 = vmatprep.subr.mxu0 0.0
  %578 = vmatpush1.msra.mxu0 0.0
  %579 = vmatprep.subr.mxu0 0.0
  %580 = vmatpush1.msra.mxu0 0.0
  %581 = vmatprep.subr.mxu0 0.0
  %582 = vmatpush1.msra.mxu0 0.0
  %583 = vmatprep.subr.mxu0 0.0
  %584 = vmatpush1.msra.mxu0 0.0
  %585 = vmatprep.subr.mxu0 0.0
  %586 = vmatpush1.msra.mxu0 0.0
  %587 = vmatprep.subr.mxu0 0.0
  %588 = vmatpush1.msra.mxu0 0.0
  %589 = vmatprep.subr.mxu0 0.0
  %590 = vmatpush1.msra.mxu0 0.0
  %591 = vmatprep.mubr.f32.mxu0 0.0
  %592 = vmatmul.mubr.f32.gmra.mrb[0].mxu0 %v525
  %v593 = vpop.f32.mrb[0].mxu0
  %v594 = vadd.f32 0.0, %v593
  %v595 = vpop.f32.mrb[0].mxu0
  %596 = vdwg.mxu0
  %v597 = vadd.f32 %v107, %v594
  %v598 = vxor.u32 %v597, 2147483648
  %v599 = vmul.f32 %v598, 1.442695
  %v600 = vpow.pop %v599
  %v601 = vadd.f32 %v600, 1.0
  %v602 = vrcp.pop %v601
  %v603 = vmul.f32 1.0, %v602
  %v604 = vtanh.pop %v597
  %v605 = vmul.f32 %v603, %v513
  %607 = vrot.lane.b32.xlu0 %v604, 64
  %v608 = vpop.permute.xlu0 %607
  %v610 = vmul.f32 %v603, %v608
  %612 = vrot.lane.b32.xlu0 %v610, 32
  %v613 = vpop.permute.xlu0 %612
  %v615 = vadd.f32 %v605, %v613
  %v616 = vtanh.pop %v615
  %618 = vrot.lane.b32.xlu0 %v616, 64
  %v619 = vpop.permute.xlu0 %618
  %v621 = vmul.f32 %v603, %v619
  %623 = vrot.lane.b32.xlu0 %v621, 32
  %v624 = vpop.permute.xlu0 %623
  %626 = vst.msk [vmem:[#allocation2 + $0x8] sm:$0x3] %vm217, %v624
  %v627 = vsel %vm114, %v624, 0
  %629 = vmatprep.subr.mxu0 0.0
  %630 = vmatpush1.msra.mxu0 %v110
  %631 = vmatprep.subr.mxu0 0.0
  %632 = vmatpush1.msra.mxu0 %v111
  %633 = vmatprep.subr.mxu0 0.0
  %634 = vmatpush1.msra.mxu0 %v112
  %635 = vmatprep.subr.mxu0 0.0
  %636 = vmatpush1.msra.mxu0 %v113
  %637 = vmatprep.subr.mxu0 0.0
  %638 = vmatpush1.msra.mxu0 0.0
  %639 = vmatprep.subr.mxu0 0.0
  %640 = vmatpush1.msra.mxu0 0.0
  %641 = vmatprep.subr.mxu0 0.0
  %642 = vmatpush1.msra.mxu0 0.0
  %643 = vmatprep.subr.mxu0 0.0
  %644 = vmatpush1.msra.mxu0 0.0
  %645 = vmatprep.subr.mxu0 0.0
  %646 = vmatpush1.msra.mxu0 0.0
  %647 = vmatprep.subr.mxu0 0.0
  %648 = vmatpush1.msra.mxu0 0.0
  %649 = vmatprep.subr.mxu0 0.0
  %650 = vmatpush1.msra.mxu0 0.0
  %651 = vmatprep.subr.mxu0 0.0
  %652 = vmatpush1.msra.mxu0 0.0
  %653 = vmatprep.subr.mxu0 0.0
  %654 = vmatpush1.msra.mxu0 0.0
  %655 = vmatprep.subr.mxu0 0.0
  %656 = vmatpush1.msra.mxu0 0.0
  %657 = vmatprep.subr.mxu0 0.0
  %658 = vmatpush1.msra.mxu0 0.0
  %659 = vmatprep.subr.mxu0 0.0
  %660 = vmatpush1.msra.mxu0 0.0
  %661 = vmatprep.subr.mxu0 0.0
  %662 = vmatpush1.msra.mxu0 0.0
  %663 = vmatprep.subr.mxu0 0.0
  %664 = vmatpush1.msra.mxu0 0.0
  %665 = vmatprep.subr.mxu0 0.0
  %666 = vmatpush1.msra.mxu0 0.0
  %667 = vmatprep.subr.mxu0 0.0
  %668 = vmatpush1.msra.mxu0 0.0
  %669 = vmatprep.subr.mxu0 0.0
  %670 = vmatpush1.msra.mxu0 0.0
  %671 = vmatprep.subr.mxu0 0.0
  %672 = vmatpush1.msra.mxu0 0.0
  %673 = vmatprep.subr.mxu0 0.0
  %674 = vmatpush1.msra.mxu0 0.0
  %675 = vmatprep.subr.mxu0 0.0
  %676 = vmatpush1.msra.mxu0 0.0
  %677 = vmatprep.subr.mxu0 0.0
  %678 = vmatpush1.msra.mxu0 0.0
  %679 = vmatprep.subr.mxu0 0.0
  %680 = vmatpush1.msra.mxu0 0.0
  %681 = vmatprep.subr.mxu0 0.0
  %682 = vmatpush1.msra.mxu0 0.0
  %683 = vmatprep.subr.mxu0 0.0
  %684 = vmatpush1.msra.mxu0 0.0
  %685 = vmatprep.subr.mxu0 0.0
  %686 = vmatpush1.msra.mxu0 0.0
  %687 = vmatprep.subr.mxu0 0.0
  %688 = vmatpush1.msra.mxu0 0.0
  %689 = vmatprep.subr.mxu0 0.0
  %690 = vmatpush1.msra.mxu0 0.0
  %691 = vmatprep.subr.mxu0 0.0
  %692 = vmatpush1.msra.mxu0 0.0
  %693 = vmatprep.mubr.f32.mxu0 0.0
  %694 = vmatmul.mubr.f32.gmra.mrb[0].mxu0 %v627
  %v695 = vpop.f32.mrb[0].mxu0
  %v696 = vadd.f32 0.0, %v695
  %v697 = vpop.f32.mrb[0].mxu0
  %698 = vdwg.mxu0
  %v699 = vadd.f32 %v107, %v696
  %v700 = vxor.u32 %v699, 2147483648
  %v701 = vmul.f32 %v700, 1.442695
  %v702 = vpow.pop %v701
  %v703 = vadd.f32 %v702, 1.0
  %v704 = vrcp.pop %v703
  %v705 = vmul.f32 1.0, %v704
  %v706 = vtanh.pop %v699
  %v707 = vmul.f32 %v705, %v615
  %709 = vrot.lane.b32.xlu0 %v706, 64
  %v710 = vpop.permute.xlu0 %709
  %v712 = vmul.f32 %v705, %v710
  %714 = vrot.lane.b32.xlu0 %v712, 32
  %v715 = vpop.permute.xlu0 %714
  %v717 = vadd.f32 %v707, %v715
  %v718 = vtanh.pop %v717
  %720 = vrot.lane.b32.xlu0 %v718, 64
  %v721 = vpop.permute.xlu0 %720
  %v723 = vmul.f32 %v705, %v721
  %725 = vrot.lane.b32.xlu0 %v723, 32
  %v726 = vpop.permute.xlu0 %725
  %728 = vst.msk [vmem:[#allocation2 + $0xa] sm:$0x3] %vm217, %v726
  %v729 = vsel %vm114, %v726, 0
  %731 = vmatprep.subr.mxu0 0.0
  %732 = vmatpush1.msra.mxu0 %v110
  %733 = vmatprep.subr.mxu0 0.0
  %734 = vmatpush1.msra.mxu0 %v111
  %735 = vmatprep.subr.mxu0 0.0
  %736 = vmatpush1.msra.mxu0 %v112
  %737 = vmatprep.subr.mxu0 0.0
  %738 = vmatpush1.msra.mxu0 %v113
  %739 = vmatprep.subr.mxu0 0.0
  %740 = vmatpush1.msra.mxu0 0.0
  %741 = vmatprep.subr.mxu0 0.0
  %742 = vmatpush1.msra.mxu0 0.0
  %743 = vmatprep.subr.mxu0 0.0
  %744 = vmatpush1.msra.mxu0 0.0
  %745 = vmatprep.subr.mxu0 0.0
  %746 = vmatpush1.msra.mxu0 0.0
  %747 = vmatprep.subr.mxu0 0.0
  %748 = vmatpush1.msra.mxu0 0.0
  %749 = vmatprep.subr.mxu0 0.0
  %750 = vmatpush1.msra.mxu0 0.0
  %751 = vmatprep.subr.mxu0 0.0
  %752 = vmatpush1.msra.mxu0 0.0
  %753 = vmatprep.subr.mxu0 0.0
  %754 = vmatpush1.msra.mxu0 0.0
  %755 = vmatprep.subr.mxu0 0.0
  %756 = vmatpush1.msra.mxu0 0.0
  %757 = vmatprep.subr.mxu0 0.0
  %758 = vmatpush1.msra.mxu0 0.0
  %759 = vmatprep.subr.mxu0 0.0
  %760 = vmatpush1.msra.mxu0 0.0
  %761 = vmatprep.subr.mxu0 0.0
  %762 = vmatpush1.msra.mxu0 0.0
  %763 = vmatprep.subr.mxu0 0.0
  %764 = vmatpush1.msra.mxu0 0.0
  %765 = vmatprep.subr.mxu0 0.0
  %766 = vmatpush1.msra.mxu0 0.0
  %767 = vmatprep.subr.mxu0 0.0
  %768 = vmatpush1.msra.mxu0 0.0
  %769 = vmatprep.subr.mxu0 0.0
  %770 = vmatpush1.msra.mxu0 0.0
  %771 = vmatprep.subr.mxu0 0.0
  %772 = vmatpush1.msra.mxu0 0.0
  %773 = vmatprep.subr.mxu0 0.0
  %774 = vmatpush1.msra.mxu0 0.0
  %775 = vmatprep.subr.mxu0 0.0
  %776 = vmatpush1.msra.mxu0 0.0
  %777 = vmatprep.subr.mxu0 0.0
  %778 = vmatpush1.msra.mxu0 0.0
  %779 = vmatprep.subr.mxu0 0.0
  %780 = vmatpush1.msra.mxu0 0.0
  %781 = vmatprep.subr.mxu0 0.0
  %782 = vmatpush1.msra.mxu0 0.0
  %783 = vmatprep.subr.mxu0 0.0
  %784 = vmatpush1.msra.mxu0 0.0
  %785 = vmatprep.subr.mxu0 0.0
  %786 = vmatpush1.msra.mxu0 0.0
  %787 = vmatprep.subr.mxu0 0.0
  %788 = vmatpush1.msra.mxu0 0.0
  %789 = vmatprep.subr.mxu0 0.0
  %790 = vmatpush1.msra.mxu0 0.0
  %791 = vmatprep.subr.mxu0 0.0
  %792 = vmatpush1.msra.mxu0 0.0
  %793 = vmatprep.subr.mxu0 0.0
  %794 = vmatpush1.msra.mxu0 0.0
  %795 = vmatprep.mubr.f32.mxu0 0.0
  %796 = vmatmul.mubr.f32.gmra.mrb[0].mxu0 %v729
  %v797 = vpop.f32.mrb[0].mxu0
  %v798 = vadd.f32 0.0, %v797
  %v799 = vpop.f32.mrb[0].mxu0
  %800 = vdwg.mxu0
  %v801 = vadd.f32 %v107, %v798
  %v802 = vxor.u32 %v801, 2147483648
  %v803 = vmul.f32 %v802, 1.442695
  %v804 = vpow.pop %v803
  %v805 = vadd.f32 %v804, 1.0
  %v806 = vrcp.pop %v805
  %v807 = vmul.f32 1.0, %v806
  %v808 = vtanh.pop %v801
  %v809 = vmul.f32 %v807, %v717
  %811 = vrot.lane.b32.xlu0 %v808, 64
  %v812 = vpop.permute.xlu0 %811
  %v814 = vmul.f32 %v807, %v812
  %816 = vrot.lane.b32.xlu0 %v814, 32
  %v817 = vpop.permute.xlu0 %816
  %v819 = vadd.f32 %v809, %v817
  %v820 = vtanh.pop %v819
  %822 = vrot.lane.b32.xlu0 %v820, 64
  %v823 = vpop.permute.xlu0 %822
  %v825 = vmul.f32 %v807, %v823
  %827 = vrot.lane.b32.xlu0 %v825, 32
  %v828 = vpop.permute.xlu0 %827
  %830 = vst.msk [vmem:[#allocation2 + $0xc] sm:$0x3] %vm217, %v828
  %v831 = vsel %vm114, %v828, 0
  %833 = vmatprep.subr.mxu0 0.0
  %834 = vmatpush1.msra.mxu0 %v110
  %835 = vmatprep.subr.mxu0 0.0
  %836 = vmatpush1.msra.mxu0 %v111
  %837 = vmatprep.subr.mxu0 0.0
  %838 = vmatpush1.msra.mxu0 %v112
  %839 = vmatprep.subr.mxu0 0.0
  %840 = vmatpush1.msra.mxu0 %v113
  %841 = vmatprep.subr.mxu0 0.0
  %842 = vmatpush1.msra.mxu0 0.0
  %843 = vmatprep.subr.mxu0 0.0
  %844 = vmatpush1.msra.mxu0 0.0
  %845 = vmatprep.subr.mxu0 0.0
  %846 = vmatpush1.msra.mxu0 0.0
  %847 = vmatprep.subr.mxu0 0.0
  %848 = vmatpush1.msra.mxu0 0.0
  %849 = vmatprep.subr.mxu0 0.0
  %850 = vmatpush1.msra.mxu0 0.0
  %851 = vmatprep.subr.mxu0 0.0
  %852 = vmatpush1.msra.mxu0 0.0
  %853 = vmatprep.subr.mxu0 0.0
  %854 = vmatpush1.msra.mxu0 0.0
  %855 = vmatprep.subr.mxu0 0.0
  %856 = vmatpush1.msra.mxu0 0.0
  %857 = vmatprep.subr.mxu0 0.0
  %858 = vmatpush1.msra.mxu0 0.0
  %859 = vmatprep.subr.mxu0 0.0
  %860 = vmatpush1.msra.mxu0 0.0
  %861 = vmatprep.subr.mxu0 0.0
  %862 = vmatpush1.msra.mxu0 0.0
  %863 = vmatprep.subr.mxu0 0.0
  %864 = vmatpush1.msra.mxu0 0.0
  %865 = vmatprep.subr.mxu0 0.0
  %866 = vmatpush1.msra.mxu0 0.0
  %867 = vmatprep.subr.mxu0 0.0
  %868 = vmatpush1.msra.mxu0 0.0
  %869 = vmatprep.subr.mxu0 0.0
  %870 = vmatpush1.msra.mxu0 0.0
  %871 = vmatprep.subr.mxu0 0.0
  %872 = vmatpush1.msra.mxu0 0.0
  %873 = vmatprep.subr.mxu0 0.0
  %874 = vmatpush1.msra.mxu0 0.0
  %875 = vmatprep.subr.mxu0 0.0
  %876 = vmatpush1.msra.mxu0 0.0
  %877 = vmatprep.subr.mxu0 0.0
  %878 = vmatpush1.msra.mxu0 0.0
  %879 = vmatprep.subr.mxu0 0.0
  %880 = vmatpush1.msra.mxu0 0.0
  %881 = vmatprep.subr.mxu0 0.0
  %882 = vmatpush1.msra.mxu0 0.0
  %883 = vmatprep.subr.mxu0 0.0
  %884 = vmatpush1.msra.mxu0 0.0
  %885 = vmatprep.subr.mxu0 0.0
  %886 = vmatpush1.msra.mxu0 0.0
  %887 = vmatprep.subr.mxu0 0.0
  %888 = vmatpush1.msra.mxu0 0.0
  %889 = vmatprep.subr.mxu0 0.0
  %890 = vmatpush1.msra.mxu0 0.0
  %891 = vmatprep.subr.mxu0 0.0
  %892 = vmatpush1.msra.mxu0 0.0
  %893 = vmatprep.subr.mxu0 0.0
  %894 = vmatpush1.msra.mxu0 0.0
  %895 = vmatprep.subr.mxu0 0.0
  %896 = vmatpush1.msra.mxu0 0.0
  %897 = vmatprep.mubr.f32.mxu0 0.0
  %898 = vmatmul.mubr.f32.gmra.mrb[0].mxu0 %v831
  %v899 = vpop.f32.mrb[0].mxu0
  %v900 = vadd.f32 0.0, %v899
  %v901 = vpop.f32.mrb[0].mxu0
  %902 = vdwg.mxu0
  %v903 = vadd.f32 %v107, %v900
  %v904 = vxor.u32 %v903, 2147483648
  %v905 = vmul.f32 %v904, 1.442695
  %v906 = vpow.pop %v905
  %v907 = vadd.f32 %v906, 1.0
  %v908 = vrcp.pop %v907
  %v909 = vmul.f32 1.0, %v908
  %v910 = vtanh.pop %v903
  %v911 = vmul.f32 %v909, %v819
  %913 = vrot.lane.b32.xlu0 %v910, 64
  %v914 = vpop.permute.xlu0 %913
  %v916 = vmul.f32 %v909, %v914
  %918 = vrot.lane.b32.xlu0 %v916, 32
  %v919 = vpop.permute.xlu0 %918
  %v921 = vadd.f32 %v911, %v919
  %v922 = vtanh.pop %v921
  %924 = vrot.lane.b32.xlu0 %v922, 64
  %v925 = vpop.permute.xlu0 %924
  %v927 = vmul.f32 %v909, %v925
  %929 = vrot.lane.b32.xlu0 %v927, 32
  %v930 = vpop.permute.xlu0 %929
  %932 = vst.msk [vmem:[#allocation2 + $0xe] sm:$0x3] %vm217, %v930
  %v933 = vld [vmem:[#allocation2] sm:$0xff]
  %v934 = vld [vmem:[#allocation2 + $0x8] sm:$0xff]
  %v935 = vld [vmem:[%s4] sm:$0xff]
  %v936 = vld [vmem:[%s4 + $0x8] sm:$0xff]
  %v937 = vld [vmem:[%s4 + $0x10] sm:$0xff]
  %v938 = vld [vmem:[%s4 + $0x18] sm:$0xff]
  %v939 = vld [vmem:[%s5] sm:$0x1]
  %v941 = vlaneseq
  %v942 = vshrl.u32 %v941, 7
  %v943 = vsub.s32 0, %v942
  %v944 = vrot.slane %v939, %v943
  %v947 = vsel %vm114, %v933, 0
  %v950 = vsel %vm114, %v934, 0
  %952 = vmatprep.subr.mxu0 0.0
  %953 = vmatpush1.msra.mxu0 %v935
  %954 = vmatprep.subr.mxu0 0.0
  %955 = vmatpush1.msra.mxu0 %v936
  %956 = vmatprep.subr.mxu0 0.0
  %957 = vmatpush1.msra.mxu0 %v937
  %958 = vmatprep.subr.mxu0 0.0
  %959 = vmatpush1.msra.mxu0 %v938
  %960 = vmatprep.subr.mxu0 0.0
  %961 = vmatpush1.msra.mxu0 0.0
  %962 = vmatprep.subr.mxu0 0.0
  %963 = vmatpush1.msra.mxu0 0.0
  %964 = vmatprep.subr.mxu0 0.0
  %965 = vmatpush1.msra.mxu0 0.0
  %966 = vmatprep.subr.mxu0 0.0
  %967 = vmatpush1.msra.mxu0 0.0
  %968 = vmatprep.subr.mxu0 0.0
  %969 = vmatpush1.msra.mxu0 0.0
  %970 = vmatprep.subr.mxu0 0.0
  %971 = vmatpush1.msra.mxu0 0.0
  %972 = vmatprep.subr.mxu0 0.0
  %973 = vmatpush1.msra.mxu0 0.0
  %974 = vmatprep.subr.mxu0 0.0
  %975 = vmatpush1.msra.mxu0 0.0
  %976 = vmatprep.subr.mxu0 0.0
  %977 = vmatpush1.msra.mxu0 0.0
  %978 = vmatprep.subr.mxu0 0.0
  %979 = vmatpush1.msra.mxu0 0.0
  %980 = vmatprep.subr.mxu0 0.0
  %981 = vmatpush1.msra.mxu0 0.0
  %982 = vmatprep.subr.mxu0 0.0
  %983 = vmatpush1.msra.mxu0 0.0
  %984 = vmatprep.subr.mxu0 0.0
  %985 = vmatpush1.msra.mxu0 0.0
  %986 = vmatprep.subr.mxu0 0.0
  %987 = vmatpush1.msra.mxu0 0.0
  %988 = vmatprep.subr.mxu0 0.0
  %989 = vmatpush1.msra.mxu0 0.0
  %990 = vmatprep.subr.mxu0 0.0
  %991 = vmatpush1.msra.mxu0 0.0
  %992 = vmatprep.subr.mxu0 0.0
  %993 = vmatpush1.msra.mxu0 0.0
  %994 = vmatprep.subr.mxu0 0.0
  %995 = vmatpush1.msra.mxu0 0.0
  %996 = vmatprep.subr.mxu0 0.0
  %997 = vmatpush1.msra.mxu0 0.0
  %998 = vmatprep.subr.mxu0 0.0
  %999 = vmatpush1.msra.mxu0 0.0
  %1000 = vmatprep.subr.mxu0 0.0
  %1001 = vmatpush1.msra.mxu0 0.0
  %1002 = vmatprep.subr.mxu0 0.0
  %1003 = vmatpush1.msra.mxu0 0.0
  %1004 = vmatprep.subr.mxu0 0.0
  %1005 = vmatpush1.msra.mxu0 0.0
  %1006 = vmatprep.subr.mxu0 0.0
  %1007 = vmatpush1.msra.mxu0 0.0
  %1008 = vmatprep.subr.mxu0 0.0
  %1009 = vmatpush1.msra.mxu0 0.0
  %1010 = vmatprep.subr.mxu0 0.0
  %1011 = vmatpush1.msra.mxu0 0.0
  %1012 = vmatprep.subr.mxu0 0.0
  %1013 = vmatpush1.msra.mxu0 0.0
  %1014 = vmatprep.subr.mxu0 0.0
  %1015 = vmatpush1.msra.mxu0 0.0
  %1016 = vmatprep.mubr.f32.mxu0 0.0
  %1017 = vmatmul.mubr.f32.gmra.mrb[0].mxu0 %v947
  %v1018 = vpop.f32.mrb[0].mxu0
  %v1019 = vadd.f32 %v944, %v1018
  %v1020 = vpop.f32.mrb[0].mxu0
  %1021 = vmatprep.mubr.f32.mxu0 0.0
  %1022 = vmatmul.mubr.f32.gmra.mrb[0].mxu0 %v950
  %v1023 = vpop.f32.mrb[0].mxu0
  %v1024 = vadd.f32 %v944, %v1023
  %v1025 = vpop.f32.mrb[0].mxu0
  %1026 = vdwg.mxu0
  %1027 = vst.msk [vmem:[%s6] sm:$0xff] %vm32, %v1019
  %1028 = vst.msk [vmem:[%s6 + $0x8] sm:$0xff] %vm32, %v1024
  // Predicated region
  $region26: #{tpu_custom_call.1} parent=0 // pred_check
    _
  $region27: #{tpu_custom_call.1} parent=0 // pred_check_branch
    %1030 = sbr.rel (0) target = $region29
  $region28: #{tpu_custom_call.1} parent=0 // pred_region
    _
  $region29: #{tpu_custom_call.1} parent=0 // pred_fallthru
    _
  // Predicated region
  $region30: #{tpu_custom_call.1} parent=0 // pred_check
    _
  $region31: #{tpu_custom_call.1} parent=0 // pred_check_branch
    %1032 = sbr.rel (0) target = $region33
  $region32: #{tpu_custom_call.1} parent=0 // pred_region
    _
  $region33: #{tpu_custom_call.1} parent=0 // pred_fallthru
    _

</llo_original>
